<compile_context>
chip_gen: v7x
topology: tpu7x:2x2x1
jax: 0.10.0
libtpu: 0.0.40
codegen_flags: <defaults>
</compile_context>

<pallas_src>
import math
import functools

import jax
import jax.numpy as jnp
import numpy as np
from jax.experimental import pallas as pl
from jax.experimental.pallas import tpu as pltpu

# ---------------- sizes ----------------
B = 2      # batch
S = 8      # sequence length
H = 32     # encoder hidden size
C = 4      # n_classes (= number of entity embeddings)
CH = 16    # classifier_hidden_size
P = 128    # projection head hidden/output size (module hard-codes 128)
VOCAB = 100
NORMALIZE_FINAL = False   # args.normalize_final_hidden


# ---------------- parameter-slab layout (rows of a (TOTAL_ROWS, 128) f32 slab) ----------------
def _blk(nrows):                       # round rows up to a sublane multiple
    return ((nrows + 7) // 8) * 8

TABLE_OFF = 0                          # rows 0..127 : word_emb (0..99), type_emb (100..101), zeros
QEFF_OFF  = TABLE_OFF + 128            # q_eff = ((E@Wq^T+bq)@Wk)/sqrt(H)   (C, H)
W1CAT_OFF = QEFF_OFF + _blk(C)         # W1cat (H, C*CH): column block c = W1[c]^T
B1_OFF    = W1CAT_OFF + _blk(H)        # b1 flattened row (1, C*CH)
W2BD_OFF  = B1_OFF + 8                 # W2 block-diagonal (C*CH, C)
B2_OFF    = W2BD_OFF + _blk(C * CH)    # b2 row (1, C)
SEL_OFF   = B2_OFF + 8                 # class-selection mask (B*C, C)
SELB_OFF  = SEL_OFF + _blk(B * C)      # per-batch group-sum matrix (B, B*C)
WP1_OFF   = SELB_OFF + _blk(B)         # Wp1^T (H, P)
BP1_OFF   = WP1_OFF + _blk(H)          # bp1 row (1, P)
WP2_OFF   = BP1_OFF + 8                # Wp2^T (P, P)
BP2_OFF   = WP2_OFF + _blk(P)          # bp2 row (1, P)
TOTAL_ROWS = BP2_OFF + 8               # = 440 rows -> single ~225 KB DMA


# ============================================================
# Fused kernel: embedding stub -> EntityAttention -> classifiers -> projection head
# Single program (no grid); everything lives in VMEM / vregs.
# ============================================================
def fused_kernel(ids_ref, tids_ref, mask_ref, slab_ref, ctx_ref, logits_ref, label_ref):
    f32 = jnp.float32
    BS = B * S

    # ---------- encoder stub: combined one-hot embedding lookup on the MXU ----------
    # TODO(synk): pretrained HuggingFace AutoModel encoder has no clean Pallas equivalent;
    # replaced by a deterministic embedding-lookup stub producing (B*S, H) hidden states.
    lane = jax.lax.broadcasted_iota(jnp.int32, (BS, 128), 1)
    onehot = ((lane == ids_ref[...]).astype(f32)
              + (lane == (tids_ref[...] + VOCAB)).astype(f32))          # (B*S, 128)
    table = slab_ref[TABLE_OFF:TABLE_OFF + 128, 0:H]                    # (128, H)
    hs = jnp.dot(onehot, table, preferred_element_type=f32)             # (B*S, H)

    # ---------- EntityAttention (attention_type=2), unrolled over the tiny batch ----------
    # q_eff already folds query linear, key linear and 1/sqrt(H); bk is softmax-invariant.
    q_eff = slab_ref[QEFF_OFF:QEFF_OFF + C, 0:H]                        # (C, H)
    neg = (1.0 - mask_ref[...]) * (-10000.0)                            # (B, S)
    for b in range(B):                                                  # B = 2, fully unrolled
        hs_b = hs[b * S:(b + 1) * S, :]                                 # (S, H)
        scores = jax.lax.dot_general(q_eff, hs_b, (((1,), (1,)), ((), ())),
                                     preferred_element_type=f32)        # (C, S)
        scores = scores + neg[b:b + 1, :]
        m = jnp.max(scores, axis=-1, keepdims=True)
        ex = jnp.exp(scores - m)
        probs = ex * pl.reciprocal(jnp.sum(ex, axis=-1, keepdims=True), approx=True)
        # dropout = identity in eval mode; context uses the ORIGINAL hidden states
        ctx_b = jnp.dot(probs, hs_b, preferred_element_type=f32)        # (C, H)
        ctx_ref[b * C:(b + 1) * C, :] = ctx_b

    ctx = ctx_ref[...]                                                  # (B*C, H), row (b,c)

    # ---------- MultipleBinaryClassifiers + sigmoid: 3 tiny matmuls, 1 sigmoid, 1 store ----------
    xcls = ctx
    if NORMALIZE_FINAL:
        # PyTorch divides by the raw norm (no eps); tiny clamp only guards a zero row.
        xcls = xcls * jax.lax.rsqrt(
            jnp.maximum(jnp.sum(xcls * xcls, axis=-1, keepdims=True), 1e-24))
    W1cat = slab_ref[W1CAT_OFF:W1CAT_OFF + H, 0:C * CH]                 # (H, C*CH)
    b1row = slab_ref[B1_OFF:B1_OFF + 1, 0:C * CH]                       # (1, C*CH)
    hc = jnp.maximum(jnp.dot(xcls, W1cat, preferred_element_type=f32) + b1row, 0.0)
    W2bd = slab_ref[W2BD_OFF:W2BD_OFF + C * CH, 0:C]                    # (C*CH, C) block-diag
    y_full = jnp.dot(hc, W2bd, preferred_element_type=f32)              # (B*C, C)
    sel = slab_ref[SEL_OFF:SEL_OFF + B * C, 0:C]                        # keep only class c on row (b,c)
    selb = slab_ref[SELB_OFF:SELB_OFF + B, 0:B * C]                     # sum the C rows of batch b
    b2row = slab_ref[B2_OFF:B2_OFF + 1, 0:C]
    y = jnp.dot(selb, y_full * sel, preferred_element_type=f32) + b2row  # (B, C) raw logits
    logits_ref[...] = 1.0 / (1.0 + jnp.exp(-y))                          # sigmoid probs (eval mode)

    # ---------- ProjectionHead + F.normalize(dim=-1) ----------
    Wp1T = slab_ref[WP1_OFF:WP1_OFF + H, :]                             # (H, P)
    bp1 = slab_ref[BP1_OFF:BP1_OFF + 1, :]
    Wp2T = slab_ref[WP2_OFF:WP2_OFF + P, :]                             # (P, P)
    bp2 = slab_ref[BP2_OFF:BP2_OFF + 1, :]
    hp = jnp.maximum(jnp.dot(ctx, Wp1T, preferred_element_type=f32) + bp1, 0.0)  # (B*C, P)
    pp = jnp.dot(hp, Wp2T, preferred_element_type=f32) + bp2                     # (B*C, P)
    # x / max(||x||, 1e-12)  ==  x * rsqrt(max(||x||^2, 1e-24))   (EUP rsqrt)
    pp = pp * jax.lax.rsqrt(jnp.maximum(jnp.sum(pp * pp, axis=-1, keepdims=True), 1e-24))
    label_ref[...] = pp                                                 # lane-dense (B*C, 128)


def fused_forward(ids_col, tids_col, attention_mask, slab):
    vmem = pl.BlockSpec(memory_space=pltpu.MemorySpace.VMEM)
    out_shapes = (
        jax.ShapeDtypeStruct((B * C, H), jnp.float32),    # ctx ("hidden_states"), 2D
        jax.ShapeDtypeStruct((B, C), jnp.float32),        # sigmoid(logits)
        jax.ShapeDtypeStruct((B * C, P), jnp.float32),    # label representations (lane-dense)
    )
    return pl.pallas_call(
        fused_kernel,
        out_shape=out_shapes,
        in_specs=[vmem, vmem, vmem, vmem],
        out_specs=(vmem, vmem, vmem),
    )(ids_col, tids_col, attention_mask.astype(jnp.float32), slab)


# ============================================================
# One-time parameter preparation: all folds / re-layouts / packing into ONE slab.
# ============================================================
def prepare_params(raw):
    # Fold the whole (input-independent) query path: q_eff = ((E @ Wq^T + bq) @ Wk) / sqrt(H).
    # bk is dropped: it only shifts every score of a (b,c) row by a constant -> softmax-invariant.
    q = jnp.dot(raw["entity_embeddings"], raw["Wq"].T) + raw["bq"]          # (C, H)
    q_eff = jnp.dot(q, raw["Wk"]) * (1.0 / math.sqrt(H))                    # (C, H)

    W1 = np.asarray(raw["W1"], np.float32)     # (C, CH, H)
    W2 = np.asarray(raw["W2"], np.float32)     # (C, 1, CH)
    W1cat = np.zeros((H, C * CH), np.float32)
    W2bd = np.zeros((C * CH, C), np.float32)
    for c in range(C):
        W1cat[:, c * CH:(c + 1) * CH] = W1[c].T
        W2bd[c * CH:(c + 1) * CH, c] = W2[c][0]

    # selection constants (depend only on the static B, C of this script)
    SEL = np.zeros((B * C, C), np.float32)
    SELB = np.zeros((B, B * C), np.float32)
    for b in range(B):
        for c in range(C):
            SEL[b * C + c, c] = 1.0
            SELB[b, b * C + c] = 1.0

    slab = np.zeros((TOTAL_ROWS, 128), np.float32)
    slab[TABLE_OFF:TABLE_OFF + VOCAB, 0:H] = np.asarray(raw["word_emb"], np.float32)
    slab[TABLE_OFF + VOCAB:TABLE_OFF + VOCAB + 2, 0:H] = np.asarray(raw["type_emb"], np.float32)
    slab[QEFF_OFF:QEFF_OFF + C, 0:H] = np.asarray(q_eff, np.float32)
    slab[W1CAT_OFF:W1CAT_OFF + H, 0:C * CH] = W1cat
    slab[B1_OFF, 0:C * CH] = np.asarray(raw["b1"], np.float32).reshape(-1)
    slab[W2BD_OFF:W2BD_OFF + C * CH, 0:C] = W2bd
    slab[B2_OFF, 0:C] = np.asarray(raw["b2"], np.float32)
    slab[SEL_OFF:SEL_OFF + B * C, 0:C] = SEL
    slab[SELB_OFF:SELB_OFF + B, 0:B * C] = SELB
    slab[WP1_OFF:WP1_OFF + H, 0:P] = np.asarray(raw["Wp1"], np.float32).T
    slab[BP1_OFF, 0:P] = np.asarray(raw["bp1"], np.float32)
    slab[WP2_OFF:WP2_OFF + P, 0:P] = np.asarray(raw["Wp2"], np.float32).T
    slab[BP2_OFF, 0:P] = np.asarray(raw["bp2"], np.float32)
    return {"slab": jnp.asarray(slab)}


# ============================================================
# Full forward (eval mode).  Wrapper only reshapes (free views) and calls the kernel.
# ============================================================
@functools.partial(jax.jit, static_argnames=("return_hidden",))
def contrastive_entity_classifier_forward(input_ids, token_type_ids, attention_mask,
                                          targets, prepared, return_hidden=True):
    ids_col = input_ids.reshape(B * S, 1).astype(jnp.int32)
    tids_col = token_type_ids.reshape(B * S, 1).astype(jnp.int32)
    ctx_flat, probs, label_flat = fused_forward(ids_col, tids_col, attention_mask,
                                                prepared["slab"])
    out = {"logits": probs,                              # NOTE: sigmoid probabilities (eval mode)
           "label_representations": label_flat.reshape(B, C, P)}
    if return_hidden:
        out["hidden_states"] = ctx_flat.reshape(B, C, H)
    # training branch (BCEWithLogitsLoss) intentionally not exercised: eval mode.
    return out


# ---------------- deterministic parameter init ----------------
def torch_linear_init(key, out_f, in_f):
    # PyTorch nn.Linear default: U(-1/sqrt(in), 1/sqrt(in)) for both W and b
    k1, k2 = jax.random.split(key)
    bound = 1.0 / math.sqrt(in_f)
    W = jax.random.uniform(k1, (out_f, in_f), jnp.float32, -bound, bound)
    b = jax.random.uniform(k2, (out_f,), jnp.float32, -bound, bound)
    return W, b


def xavier_uniform_stack(key, n, out_f, in_f):
    bound = math.sqrt(6.0 / (in_f + out_f))
    return jax.random.uniform(key, (n, out_f, in_f), jnp.float32, -bound, bound)


# ---------------- pure-JAX reference (validates every parameter-side fold) ----------------
def reference_forward(input_ids, token_type_ids, attention_mask, params):
    hidden = params["word_emb"][input_ids] + params["type_emb"][token_type_ids]
    q = jnp.dot(params["entity_embeddings"], params["Wq"].T) + params["bq"]
    k = jnp.einsum("bsh,oh->bso", hidden, params["Wk"]) + params["bk"]
    scores = jnp.einsum("ch,bsh->bcs", q, k) / math.sqrt(H)
    scores = scores + (1.0 - attention_mask)[:, None, :] * -10000.0
    probs = jax.nn.softmax(scores, axis=-1)
    ctx = jnp.einsum("bcs,bsh->bch", probs, hidden)
    cols = []
    for c in range(C):
        xc = ctx[:, c]
        hh = jax.nn.relu(xc @ params["W1"][c].T + params["b1"][c])
        cols.append(hh @ params["W2"][c].T + params["b2"][c])
    sig = jax.nn.sigmoid(jnp.concatenate(cols, axis=-1))
    ph = jax.nn.relu(jnp.einsum("bch,oh->bco", ctx, params["Wp1"]) + params["bp1"])
    pp = jnp.einsum("bch,oh->bco", ph, params["Wp2"]) + params["bp2"]
    pp = pp / jnp.maximum(jnp.sqrt(jnp.sum(pp * pp, axis=-1, keepdims=True)), 1e-12)
    return ctx, sig, pp


if __name__ == "__main__":
    key = jax.random.PRNGKey(0)
    ks = jax.random.split(key, 12)

    params = {
        "entity_embeddings": jax.random.normal(ks[0], (C, H), jnp.float32),
        "word_emb": jax.random.normal(ks[1], (VOCAB, H), jnp.float32) * 0.5,
        "type_emb": jax.random.normal(ks[2], (2, H), jnp.float32) * 0.1,
    }
    params["Wq"], params["bq"] = torch_linear_init(ks[3], H, H)
    params["Wk"], params["bk"] = torch_linear_init(ks[4], H, H)
    # BinaryClassifier.init_parameters: xavier_uniform weights, zero biases
    params["W1"] = xavier_uniform_stack(ks[5], C, CH, H)
    params["b1"] = jnp.zeros((C, CH), jnp.float32)
    params["W2"] = xavier_uniform_stack(ks[6], C, 1, CH)
    params["b2"] = jnp.zeros((C,), jnp.float32)
    params["Wp1"], params["bp1"] = torch_linear_init(ks[7], P, H)
    params["Wp2"], params["bp2"] = torch_linear_init(ks[8], P, P)

    prepared = prepare_params(params)   # one-time folds + single-slab packing

    input_ids = jax.random.randint(ks[9], (B, S), 0, VOCAB)
    token_type_ids = jnp.zeros((B, S), jnp.int32)
    attention_mask = jnp.array([[1, 1, 1, 1, 1, 0, 0, 0],
                                [1, 1, 1, 1, 1, 1, 1, 0]], jnp.float32)
    targets = jax.random.bernoulli(ks[10], 0.5, (B, C)).astype(jnp.float32)  # unused (eval)

    out = contrastive_entity_classifier_forward(input_ids, token_type_ids, attention_mask,
                                                targets, prepared, return_hidden=True)
    jax.block_until_ready(out)

    ref_ctx, ref_logits, ref_proj = reference_forward(input_ids, token_type_ids,
                                                      attention_mask, params)
    np.testing.assert_allclose(np.asarray(out["hidden_states"]), np.asarray(ref_ctx),
                               rtol=2e-2, atol=2e-2)
    np.testing.assert_allclose(np.asarray(out["logits"]), np.asarray(ref_logits),
                               rtol=2e-2, atol=2e-2)
    np.testing.assert_allclose(np.asarray(out["label_representations"]), np.asarray(ref_proj),
                               rtol=2e-2, atol=2e-2)

    print("KERNEL_OK")
</pallas_src>

<mosaic_0001>
module attributes {stable_mosaic.version = 11 : i64} {
  func.func @fused_kernel(%arg0: memref<16x1xi32, #tpu.memory_space<vmem>>, %arg1: memref<16x1xi32, #tpu.memory_space<vmem>>, %arg2: memref<2x8xf32, #tpu.memory_space<vmem>>, %arg3: memref<440x128xf32, #tpu.memory_space<vmem>>, %arg4: memref<8x32xf32, #tpu.memory_space<vmem>>, %arg5: memref<2x4xf32, #tpu.memory_space<vmem>>, %arg6: memref<8x128xf32, #tpu.memory_space<vmem>>) attributes {dimension_semantics = [], scalar_prefetch = 0 : i64, scratch_operands = 0 : i64, tpu.core_type = #tpu.core_type<tc>} {
    %0 = tpu.iota {dimensions = array<i32: 1>} : vector<16x128xi32>
    %c0 = arith.constant 0 : index
    %c0_0 = arith.constant 0 : index
    %1 = vector.load %arg0[%c0, %c0_0] : memref<16x1xi32, #tpu.memory_space<vmem>>, vector<16x1xi32>
    %2 = vector.broadcast %1 : vector<16x1xi32> to vector<16x128xi32>
    %3 = arith.cmpi eq, %0, %2 : vector<16x128xi32>
    %4 = arith.extui %3 : vector<16x128xi1> to vector<16x128xi32>
    %5 = arith.sitofp %4 : vector<16x128xi32> to vector<16x128xf32>
    %c0_1 = arith.constant 0 : index
    %c0_2 = arith.constant 0 : index
    %6 = vector.load %arg1[%c0_1, %c0_2] : memref<16x1xi32, #tpu.memory_space<vmem>>, vector<16x1xi32>
    %c100_i32 = arith.constant 100 : i32
    %7 = vector.broadcast %c100_i32 : i32 to vector<16x1xi32>
    %8 = arith.addi %6, %7 : vector<16x1xi32>
    %9 = vector.broadcast %8 : vector<16x1xi32> to vector<16x128xi32>
    %10 = arith.cmpi eq, %0, %9 : vector<16x128xi32>
    %11 = arith.extui %10 : vector<16x128xi1> to vector<16x128xi32>
    %12 = arith.sitofp %11 : vector<16x128xi32> to vector<16x128xf32>
    %13 = arith.addf %5, %12 : vector<16x128xf32>
    %c0_3 = arith.constant 0 : index
    %c0_4 = arith.constant 0 : index
    %14 = vector.load %arg3[%c0_3, %c0_4] : memref<440x128xf32, #tpu.memory_space<vmem>>, vector<128x32xf32>
    %cst = arith.constant dense<0.000000e+00> : vector<16x32xf32>
    %15 = tpu.matmul %13, %14, %cst {dimension_numbers = #tpu.dot_dimension_numbers<[1], [0], [0], [1], [0, 0, 1, 1], [], []>} : vector<16x128xf32>, vector<128x32xf32>, vector<16x32xf32> -> vector<16x32xf32>
    %c128 = arith.constant 128 : index
    %c0_5 = arith.constant 0 : index
    %16 = vector.load %arg3[%c128, %c0_5] : memref<440x128xf32, #tpu.memory_space<vmem>>, vector<4x32xf32>
    %c0_6 = arith.constant 0 : index
    %c0_7 = arith.constant 0 : index
    %17 = vector.load %arg2[%c0_6, %c0_7] : memref<2x8xf32, #tpu.memory_space<vmem>>, vector<2x8xf32>
    %cst_8 = arith.constant 1.000000e+00 : f32
    %18 = vector.broadcast %cst_8 : f32 to vector<2x8xf32>
    %19 = arith.subf %18, %17 : vector<2x8xf32>
    %cst_9 = arith.constant -1.000000e+04 : f32
    %20 = vector.broadcast %cst_9 : f32 to vector<2x8xf32>
    %21 = arith.mulf %19, %20 : vector<2x8xf32>
    %22 = vector.extract_strided_slice %15 {offsets = [0, 0], sizes = [8, 32], strides = [1, 1]} : vector<16x32xf32> to vector<8x32xf32>
    %cst_10 = arith.constant dense<0.000000e+00> : vector<4x8xf32>
    %23 = tpu.matmul %16, %22, %cst_10 {dimension_numbers = #tpu.dot_dimension_numbers<[1], [1], [0], [0], [0, 0, 1, 0], [], []>} : vector<4x32xf32>, vector<8x32xf32>, vector<4x8xf32> -> vector<4x8xf32>
    %24 = vector.extract_strided_slice %21 {offsets = [0, 0], sizes = [1, 8], strides = [1, 1]} : vector<2x8xf32> to vector<1x8xf32>
    %25 = vector.broadcast %24 : vector<1x8xf32> to vector<4x8xf32>
    %26 = arith.addf %23, %25 : vector<4x8xf32>
    %cst_11 = arith.constant dense<0xFF800000> : vector<4xf32>
    %27 = vector.multi_reduction <maximumf>, %26, %cst_11 [1] : vector<4x8xf32> to vector<4xf32>
    %28 = vector.shape_cast %27 : vector<4xf32> to vector<4x1xf32>
    %29 = vector.broadcast %28 : vector<4x1xf32> to vector<4x8xf32>
    %30 = arith.subf %26, %29 : vector<4x8xf32>
    %31 = math.exp %30 : vector<4x8xf32>
    %cst_12 = arith.constant dense<0.000000e+00> : vector<4xf32>
    %32 = vector.multi_reduction <add>, %31, %cst_12 [1] : vector<4x8xf32> to vector<4xf32>
    %33 = vector.shape_cast %32 : vector<4xf32> to vector<4x1xf32>
    %34 = tpu.reciprocal %33 {approx = true} : vector<4x1xf32> -> vector<4x1xf32>
    %35 = vector.broadcast %34 : vector<4x1xf32> to vector<4x8xf32>
    %36 = arith.mulf %31, %35 : vector<4x8xf32>
    %cst_13 = arith.constant dense<0.000000e+00> : vector<4x32xf32>
    %37 = tpu.matmul %36, %22, %cst_13 {dimension_numbers = #tpu.dot_dimension_numbers<[1], [0], [0], [1], [0, 0, 1, 1], [], []>} : vector<4x8xf32>, vector<8x32xf32>, vector<4x32xf32> -> vector<4x32xf32>
    %c0_14 = arith.constant 0 : index
    %c0_15 = arith.constant 0 : index
    %38 = vector.load %arg4[%c0_14, %c0_15] : memref<8x32xf32, #tpu.memory_space<vmem>>, vector<4x32xf32>
    tpu.vector_store %arg4[%c0_14, %c0_15], %37 {strides = array<i32>} : memref<8x32xf32, #tpu.memory_space<vmem>>, vector<4x32xf32>,
    %39 = vector.extract_strided_slice %15 {offsets = [8, 0], sizes = [8, 32], strides = [1, 1]} : vector<16x32xf32> to vector<8x32xf32>
    %cst_16 = arith.constant dense<0.000000e+00> : vector<4x8xf32>
    %40 = tpu.matmul %16, %39, %cst_16 {dimension_numbers = #tpu.dot_dimension_numbers<[1], [1], [0], [0], [0, 0, 1, 0], [], []>} : vector<4x32xf32>, vector<8x32xf32>, vector<4x8xf32> -> vector<4x8xf32>
    %41 = vector.extract_strided_slice %21 {offsets = [1, 0], sizes = [1, 8], strides = [1, 1]} : vector<2x8xf32> to vector<1x8xf32>
    %42 = vector.broadcast %41 : vector<1x8xf32> to vector<4x8xf32>
    %43 = arith.addf %40, %42 : vector<4x8xf32>
    %cst_17 = arith.constant dense<0xFF800000> : vector<4xf32>
    %44 = vector.multi_reduction <maximumf>, %43, %cst_17 [1] : vector<4x8xf32> to vector<4xf32>
    %45 = vector.shape_cast %44 : vector<4xf32> to vector<4x1xf32>
    %46 = vector.broadcast %45 : vector<4x1xf32> to vector<4x8xf32>
    %47 = arith.subf %43, %46 : vector<4x8xf32>
    %48 = math.exp %47 : vector<4x8xf32>
    %cst_18 = arith.constant dense<0.000000e+00> : vector<4xf32>
    %49 = vector.multi_reduction <add>, %48, %cst_18 [1] : vector<4x8xf32> to vector<4xf32>
    %50 = vector.shape_cast %49 : vector<4xf32> to vector<4x1xf32>
    %51 = tpu.reciprocal %50 {approx = true} : vector<4x1xf32> -> vector<4x1xf32>
    %52 = vector.broadcast %51 : vector<4x1xf32> to vector<4x8xf32>
    %53 = arith.mulf %48, %52 : vector<4x8xf32>
    %cst_19 = arith.constant dense<0.000000e+00> : vector<4x32xf32>
    %54 = tpu.matmul %53, %39, %cst_19 {dimension_numbers = #tpu.dot_dimension_numbers<[1], [0], [0], [1], [0, 0, 1, 1], [], []>} : vector<4x8xf32>, vector<8x32xf32>, vector<4x32xf32> -> vector<4x32xf32>
    %c4 = arith.constant 4 : index
    %c0_20 = arith.constant 0 : index
    %55 = vector.load %arg4[%c4, %c0_20] : memref<8x32xf32, #tpu.memory_space<vmem>>, vector<4x32xf32>
    tpu.vector_store %arg4[%c4, %c0_20], %54 {strides = array<i32>} : memref<8x32xf32, #tpu.memory_space<vmem>>, vector<4x32xf32>,
    %c0_21 = arith.constant 0 : index
    %c0_22 = arith.constant 0 : index
    %56 = vector.load %arg4[%c0_21, %c0_22] : memref<8x32xf32, #tpu.memory_space<vmem>>, vector<8x32xf32>
    %c136 = arith.constant 136 : index
    %c0_23 = arith.constant 0 : index
    %57 = vector.load %arg3[%c136, %c0_23] : memref<440x128xf32, #tpu.memory_space<vmem>>, vector<32x64xf32>
    %c168 = arith.constant 168 : index
    %c0_24 = arith.constant 0 : index
    %58 = vector.load %arg3[%c168, %c0_24] : memref<440x128xf32, #tpu.memory_space<vmem>>, vector<1x64xf32>
    %cst_25 = arith.constant dense<0.000000e+00> : vector<8x64xf32>
    %59 = tpu.matmul %56, %57, %cst_25 {dimension_numbers = #tpu.dot_dimension_numbers<[1], [0], [0], [1], [0, 0, 1, 1], [], []>} : vector<8x32xf32>, vector<32x64xf32>, vector<8x64xf32> -> vector<8x64xf32>
    %60 = vector.broadcast %58 : vector<1x64xf32> to vector<8x64xf32>
    %61 = arith.addf %59, %60 : vector<8x64xf32>
    %cst_26 = arith.constant 0.000000e+00 : f32
    %62 = vector.broadcast %cst_26 : f32 to vector<8x64xf32>
    %63 = arith.maximumf %61, %62 : vector<8x64xf32>
    %c176 = arith.constant 176 : index
    %c0_27 = arith.constant 0 : index
    %64 = vector.load %arg3[%c176, %c0_27] : memref<440x128xf32, #tpu.memory_space<vmem>>, vector<64x4xf32>
    %cst_28 = arith.constant dense<0.000000e+00> : vector<8x4xf32>
    %65 = tpu.matmul %63, %64, %cst_28 {dimension_numbers = #tpu.dot_dimension_numbers<[1], [0], [0], [1], [0, 0, 1, 1], [], []>} : vector<8x64xf32>, vector<64x4xf32>, vector<8x4xf32> -> vector<8x4xf32>
    %c248 = arith.constant 248 : index
    %c0_29 = arith.constant 0 : index
    %66 = vector.load %arg3[%c248, %c0_29] : memref<440x128xf32, #tpu.memory_space<vmem>>, vector<8x4xf32>
    %c256 = arith.constant 256 : index
    %c0_30 = arith.constant 0 : index
    %67 = vector.load %arg3[%c256, %c0_30] : memref<440x128xf32, #tpu.memory_space<vmem>>, vector<2x8xf32>
    %c240 = arith.constant 240 : index
    %c0_31 = arith.constant 0 : index
    %68 = vector.load %arg3[%c240, %c0_31] : memref<440x128xf32, #tpu.memory_space<vmem>>, vector<1x4xf32>
    %69 = arith.mulf %65, %66 : vector<8x4xf32>
    %cst_32 = arith.constant dense<0.000000e+00> : vector<2x4xf32>
    %70 = tpu.matmul %67, %69, %cst_32 {dimension_numbers = #tpu.dot_dimension_numbers<[1], [0], [0], [1], [0, 0, 1, 1], [], []>} : vector<2x8xf32>, vector<8x4xf32>, vector<2x4xf32> -> vector<2x4xf32>
    %71 = vector.broadcast %68 : vector<1x4xf32> to vector<2x4xf32>
    %72 = arith.addf %70, %71 : vector<2x4xf32>
    %cst_33 = arith.constant 0.000000e+00 : f32
    %73 = vector.broadcast %cst_33 : f32 to vector<2x4xf32>
    %74 = arith.subf %73, %72 : vector<2x4xf32>
    %75 = math.exp %74 : vector<2x4xf32>
    %cst_34 = arith.constant 1.000000e+00 : f32
    %76 = vector.broadcast %cst_34 : f32 to vector<2x4xf32>
    %77 = arith.addf %76, %75 : vector<2x4xf32>
    %cst_35 = arith.constant 1.000000e+00 : f32
    %78 = vector.broadcast %cst_35 : f32 to vector<2x4xf32>
    %79 = arith.divf %78, %77 : vector<2x4xf32>
    %c0_36 = arith.constant 0 : index
    %c0_37 = arith.constant 0 : index
    %80 = vector.load %arg5[%c0_36, %c0_37] : memref<2x4xf32, #tpu.memory_space<vmem>>, vector<2x4xf32>
    tpu.vector_store %arg5[%c0_36, %c0_37], %79 {strides = array<i32>} : memref<2x4xf32, #tpu.memory_space<vmem>>, vector<2x4xf32>,
    %c264 = arith.constant 264 : index
    %c0_38 = arith.constant 0 : index
    %81 = vector.load %arg3[%c264, %c0_38] : memref<440x128xf32, #tpu.memory_space<vmem>>, vector<32x128xf32>
    %c296 = arith.constant 296 : index
    %c0_39 = arith.constant 0 : index
    %82 = vector.load %arg3[%c296, %c0_39] : memref<440x128xf32, #tpu.memory_space<vmem>>, vector<1x128xf32>
    %c304 = arith.constant 304 : index
    %c0_40 = arith.constant 0 : index
    %83 = vector.load %arg3[%c304, %c0_40] : memref<440x128xf32, #tpu.memory_space<vmem>>, vector<128x128xf32>
    %c432 = arith.constant 432 : index
    %c0_41 = arith.constant 0 : index
    %84 = vector.load %arg3[%c432, %c0_41] : memref<440x128xf32, #tpu.memory_space<vmem>>, vector<1x128xf32>
    %cst_42 = arith.constant dense<0.000000e+00> : vector<8x128xf32>
    %85 = tpu.matmul %56, %81, %cst_42 {dimension_numbers = #tpu.dot_dimension_numbers<[1], [0], [0], [1], [0, 0, 1, 1], [], []>} : vector<8x32xf32>, vector<32x128xf32>, vector<8x128xf32> -> vector<8x128xf32>
    %86 = vector.broadcast %82 : vector<1x128xf32> to vector<8x128xf32>
    %87 = arith.addf %85, %86 : vector<8x128xf32>
    %cst_43 = arith.constant 0.000000e+00 : f32
    %88 = vector.broadcast %cst_43 : f32 to vector<8x128xf32>
    %89 = arith.maximumf %87, %88 : vector<8x128xf32>
    %cst_44 = arith.constant dense<0.000000e+00> : vector<8x128xf32>
    %90 = tpu.matmul %89, %83, %cst_44 {dimension_numbers = #tpu.dot_dimension_numbers<[1], [0], [0], [1], [0, 0, 1, 1], [], []>} : vector<8x128xf32>, vector<128x128xf32>, vector<8x128xf32> -> vector<8x128xf32>
    %91 = vector.broadcast %84 : vector<1x128xf32> to vector<8x128xf32>
    %92 = arith.addf %90, %91 : vector<8x128xf32>
    %93 = arith.mulf %92, %92 : vector<8x128xf32>
    %cst_45 = arith.constant dense<0.000000e+00> : vector<8xf32>
    %94 = vector.multi_reduction <add>, %93, %cst_45 [1] : vector<8x128xf32> to vector<8xf32>
    %95 = vector.shape_cast %94 : vector<8xf32> to vector<8x1xf32>
    %cst_46 = arith.constant 1.000000e-24 : f32
    %96 = vector.broadcast %cst_46 : f32 to vector<8x1xf32>
    %97 = arith.maximumf %95, %96 : vector<8x1xf32>
    %98 = math.rsqrt %97 : vector<8x1xf32>
    %99 = vector.broadcast %98 : vector<8x1xf32> to vector<8x128xf32>
    %100 = arith.mulf %92, %99 : vector<8x128xf32>
    %c0_47 = arith.constant 0 : index
    %c0_48 = arith.constant 0 : index
    %101 = vector.load %arg6[%c0_47, %c0_48] : memref<8x128xf32, #tpu.memory_space<vmem>>, vector<8x128xf32>
    tpu.vector_store %arg6[%c0_47, %c0_48], %100 {strides = array<i32>} : memref<8x128xf32, #tpu.memory_space<vmem>>, vector<8x128xf32>,
    return
  }
}

</mosaic_0001>

<llo_original>
// kernel: contrastive_entity_classifier_forward.1
$region0: #{contrastive_entity_classifier_forward.1}
  #allocation0 [shape = 'u32[]', space=smem, size = 0x4, offset = 0x4, fixed_abs, tag = 'smem constant byte address 0x4 - core index']
  #allocation1 [shape = 'u32[144,128]{1,0:T(1,128)}', space=vmem, size = 0x12000, scoped, tag = 'internal scratch']
  %s0 = inlined_call_operand.vmem [shape: s32[16,1], index: 0, kind: input, shape index: {}]
  %s1 = inlined_call_operand.vmem [shape: s32[16,1], index: 1, kind: input, shape index: {}]
  %s2 = inlined_call_operand.vmem [shape: f32[2,8], index: 2, kind: input, shape index: {}]
  %s3 = inlined_call_operand.hbm [shape: f32[440,128], index: 3, kind: input, shape index: {}]
  %s4 = inlined_call_operand.hbm [shape: f32[8,32], index: 4, kind: output, shape index: {0}]
  %s5 = inlined_call_operand.hbm [shape: f32[2,4], index: 5, kind: output, shape index: {1}]
  %s6 = inlined_call_operand.hbm [shape: f32[8,128], index: 6, kind: output, shape index: {2}]
  %7 = xla_tuple %s4, %s5, %s6
  %s8 = sld [smem:[#allocation0]]
  $region46: #{contrastive_entity_classifier_forward.1} parent=0
    _
  %s10 = ssub.s32 1, %s8
  %s11 = scalar_select 0, %s10, %s8
  $region1: #{contrastive_entity_classifier_forward.1} parent=0
    #allocation2 [shape = 'u8[225280]{0}', space=vmem, size = 0x37000, scoped, tag = 'input window, operand 3, single buffered']
    #allocation3 [shape = 's32[1]{0}', space=sflag, size = 0x4, scoped, tag = 'scoped memory for contrastive_entity_classifier_forward.1']
    #allocation4 [shape = 's32[1]{0}', space=sflag, size = 0x4, scoped, tag = 'scoped memory for contrastive_entity_classifier_forward.1']
    #allocation5 [shape = 'u8[4096]{0}', space=vmem, size = 0x1000, scoped, tag = 'output window, operand 0, single buffered']
    #allocation6 [shape = 'u8[1024]{0}', space=vmem, size = 0x400, scoped, tag = 'output window, operand 1, single buffered']
    #allocation7 [shape = 's32[1]{0}', space=sflag, size = 0x4, scoped, tag = 'scoped memory for contrastive_entity_classifier_forward.1']
    #allocation8 [shape = 'u8[4096]{0}', space=vmem, size = 0x1000, scoped, tag = 'output window, operand 2, single buffered']
    %12 = vsyncpa [#allocation3], 0
    %13 = vsyncpa [#allocation4], 0
    %14 = vsyncpa [#allocation7], 0
    // Predicated region
    $region2: #{contrastive_entity_classifier_forward.1} parent=1 // pred_check
      _
    $region3: #{contrastive_entity_classifier_forward.1} parent=1 // pred_check_branch
      %16 = sbr.rel (0) target = $region5
    $region4: #{contrastive_entity_classifier_forward.1} parent=1 // pred_region
      _
    $region5: #{contrastive_entity_classifier_forward.1} parent=1 // pred_fallthru
      _
    // Predicated region
    $region6: #{contrastive_entity_classifier_forward.1} parent=1 // pred_check
      _
    $region7: #{contrastive_entity_classifier_forward.1} parent=1 // pred_check_branch
      %18 = sbr.rel (0) target = $region9
    $region8: #{contrastive_entity_classifier_forward.1} parent=1 // pred_region
      _
    $region9: #{contrastive_entity_classifier_forward.1} parent=1 // pred_fallthru
      _
    // Predicated region
    $region10: #{contrastive_entity_classifier_forward.1} parent=1 // pred_check
      _
    $region11: #{contrastive_entity_classifier_forward.1} parent=1 // pred_check_branch
      %20 = sbr.rel (0) target = $region13
    $region12: #{contrastive_entity_classifier_forward.1} parent=1 // pred_region
      _
    $region13: #{contrastive_entity_classifier_forward.1} parent=1 // pred_fallthru
      _
    // Predicated region
    $region14: #{contrastive_entity_classifier_forward.1} parent=1 // pred_check
      _
    $region15: #{contrastive_entity_classifier_forward.1} parent=1 // pred_check_branch
      %22 = sbr.rel (0) target = $region17
    $region16: #{contrastive_entity_classifier_forward.1} parent=1 // pred_region
      %s24 = ssub.s32 7040, 7040
      %25 = vsyncadd [#allocation3], %s24
      %s26 = sshll.u32 [#allocation2], 4
      %s27 = int_to_ptr.vmem [resolvable:$true] %s26
      %32 = dma.hbm_to_vmem [thread:$0]  %s3, 7040, %s27, [#allocation3], 128, 128, 8
    $region17: #{contrastive_entity_classifier_forward.1} parent=1 // pred_fallthru
      _
    // Predicated region
    $region18: #{contrastive_entity_classifier_forward.1} parent=1 // pred_check
      _
    $region19: #{contrastive_entity_classifier_forward.1} parent=1 // pred_check_branch
      %34 = sbr.rel (0) target = $region21
    $region20: #{contrastive_entity_classifier_forward.1} parent=1 // pred_region
      %35 = dma.done [#allocation3], 7040
    $region21: #{contrastive_entity_classifier_forward.1} parent=1 // pred_fallthru
      _
    %v36 = vlaneseq
    %v37 = vand.u32 %v36, 127
    %v38 = vld [vmem:[%s0] sm:$0xff]
    %v39 = vld [vmem:[%s0 + $0x8] sm:$0xff]
    %40 = vset.pattern.permute.xlu0 0
    %41 = vperm.xlu0 %40, %v38
    %v42 = vpop.permute.xlu0 %41
    %43 = vset.pattern.permute.xlu0 0
    %44 = vperm.xlu0 %43, %v39
    %v45 = vpop.permute.xlu0 %44
    %vm46 = vcmp.eq.s32.totalorder %v37, %v42
    %vm47 = vcmp.eq.s32.totalorder %v37, %v45
    %v48 = vsel %vm46, 1, 0
    %v49 = vsel %vm47, 1, 0
    %v50 = vcvt.s32.f32 %v48
    %v51 = vcvt.s32.f32 %v49
    %v52 = vld [vmem:[%s1] sm:$0xff]
    %v53 = vld [vmem:[%s1 + $0x8] sm:$0xff]
    %v54 = vadd.s32 %v52, 100
    %v55 = vadd.s32 %v53, 100
    %56 = vset.pattern.permute.xlu0 0
    %57 = vperm.xlu0 %56, %v54
    %v58 = vpop.permute.xlu0 %57
    %59 = vset.pattern.permute.xlu0 0
    %60 = vperm.xlu0 %59, %v55
    %v61 = vpop.permute.xlu0 %60
    %vm62 = vcmp.eq.s32.totalorder %v37, %v58
    %vm63 = vcmp.eq.s32.totalorder %v37, %v61
    %v64 = vsel %vm62, 1, 0
    %v65 = vsel %vm63, 1, 0
    %v66 = vcvt.s32.f32 %v64
    %v67 = vcvt.s32.f32 %v65
    %v68 = vadd.f32 %v50, %v66
    %v69 = vadd.f32 %v51, %v67
    %v70 = vld [vmem:[#allocation2] sm:$0xff]
    %v71 = vld [vmem:[#allocation2 + $0x8] sm:$0xff]
    %v72 = vld [vmem:[#allocation2 + $0x10] sm:$0xff]
    %v73 = vld [vmem:[#allocation2 + $0x18] sm:$0xff]
    %v74 = vld [vmem:[#allocation2 + $0x20] sm:$0xff]
    %v75 = vld [vmem:[#allocation2 + $0x28] sm:$0xff]
    %v76 = vld [vmem:[#allocation2 + $0x30] sm:$0xff]
    %v77 = vld [vmem:[#allocation2 + $0x38] sm:$0xff]
    %v78 = vld [vmem:[#allocation2 + $0x40] sm:$0xff]
    %v79 = vld [vmem:[#allocation2 + $0x48] sm:$0xff]
    %v80 = vld [vmem:[#allocation2 + $0x50] sm:$0xff]
    %v81 = vld [vmem:[#allocation2 + $0x58] sm:$0xff]
    %v82 = vld [vmem:[#allocation2 + $0x60] sm:$0xff]
    %v83 = vld [vmem:[#allocation2 + $0x68] sm:$0xff]
    %v84 = vld [vmem:[#allocation2 + $0x70] sm:$0xff]
    %v85 = vld [vmem:[#allocation2 + $0x78] sm:$0xff]
    %86 = vmatprep.subr.mxu0 0.0
    %87 = vmatpush1.msra.mxu0 %v70
    %88 = vmatprep.subr.mxu0 0.0
    %89 = vmatpush1.msra.mxu0 %v71
    %90 = vmatprep.subr.mxu0 0.0
    %91 = vmatpush1.msra.mxu0 %v72
    %92 = vmatprep.subr.mxu0 0.0
    %93 = vmatpush1.msra.mxu0 %v73
    %94 = vmatprep.subr.mxu0 0.0
    %95 = vmatpush1.msra.mxu0 %v74
    %96 = vmatprep.subr.mxu0 0.0
    %97 = vmatpush1.msra.mxu0 %v75
    %98 = vmatprep.subr.mxu0 0.0
    %99 = vmatpush1.msra.mxu0 %v76
    %100 = vmatprep.subr.mxu0 0.0
    %101 = vmatpush1.msra.mxu0 %v77
    %102 = vmatprep.subr.mxu0 0.0
    %103 = vmatpush1.msra.mxu0 %v78
    %104 = vmatprep.subr.mxu0 0.0
    %105 = vmatpush1.msra.mxu0 %v79
    %106 = vmatprep.subr.mxu0 0.0
    %107 = vmatpush1.msra.mxu0 %v80
    %108 = vmatprep.subr.mxu0 0.0
    %109 = vmatpush1.msra.mxu0 %v81
    %110 = vmatprep.subr.mxu0 0.0
    %111 = vmatpush1.msra.mxu0 %v82
    %112 = vmatprep.subr.mxu0 0.0
    %113 = vmatpush1.msra.mxu0 %v83
    %114 = vmatprep.subr.mxu0 0.0
    %115 = vmatpush1.msra.mxu0 %v84
    %116 = vmatprep.subr.mxu0 0.0
    %117 = vmatpush1.msra.mxu0 %v85
    %118 = vmatprep.subr.mxu0 0.0
    %119 = vmatpush1.msra.mxu0 0.0
    %120 = vmatprep.subr.mxu0 0.0
    %121 = vmatpush1.msra.mxu0 0.0
    %122 = vmatprep.subr.mxu0 0.0
    %123 = vmatpush1.msra.mxu0 0.0
    %124 = vmatprep.subr.mxu0 0.0
    %125 = vmatpush1.msra.mxu0 0.0
    %126 = vmatprep.subr.mxu0 0.0
    %127 = vmatpush1.msra.mxu0 0.0
    %128 = vmatprep.subr.mxu0 0.0
    %129 = vmatpush1.msra.mxu0 0.0
    %130 = vmatprep.subr.mxu0 0.0
    %131 = vmatpush1.msra.mxu0 0.0
    %132 = vmatprep.subr.mxu0 0.0
    %133 = vmatpush1.msra.mxu0 0.0
    %134 = vmatprep.subr.mxu0 0.0
    %135 = vmatpush1.msra.mxu0 0.0
    %136 = vmatprep.subr.mxu0 0.0
    %137 = vmatpush1.msra.mxu0 0.0
    %138 = vmatprep.subr.mxu0 0.0
    %139 = vmatpush1.msra.mxu0 0.0
    %140 = vmatprep.subr.mxu0 0.0
    %141 = vmatpush1.msra.mxu0 0.0
    %142 = vmatprep.subr.mxu0 0.0
    %143 = vmatpush1.msra.mxu0 0.0
    %144 = vmatprep.subr.mxu0 0.0
    %145 = vmatpush1.msra.mxu0 0.0
    %146 = vmatprep.subr.mxu0 0.0
    %147 = vmatpush1.msra.mxu0 0.0
    %148 = vmatprep.subr.mxu0 0.0
    %149 = vmatpush1.msra.mxu0 0.0
    %150 = vmatprep.mubr.f32.mxu0 0.0
    %151 = vmatmul.mubr.f32.gmra.mrb[0].mxu0 %v68
    %v152 = vpop.f32.mrb[0].mxu0
    %v153 = vadd.f32 0.0, %v152
    %v154 = vpop.f32.mrb[0].mxu0
    %155 = vmatprep.mubr.f32.mxu0 0.0
    %156 = vmatmul.mubr.f32.gmra.mrb[0].mxu0 %v69
    %v157 = vpop.f32.mrb[0].mxu0
    %v158 = vadd.f32 0.0, %v157
    %v159 = vpop.f32.mrb[0].mxu0
    %160 = vdwg.mxu0
    %v161 = vld [vmem:[#allocation2 + $0x80] sm:$0xf]
    %v162 = vld [vmem:[%s2] sm:$0x3]
    %v163 = vsub.f32 1.0, %v162
    %v164 = vmul.f32 %v163, -10000.0
    %v165 = vlaneseq
    %v166 = vshrl.u32 %v165, 7
    %v167 = vsub.s32 0, %v166
    %v168 = vrot.slane %v164, %v167
    %vm169 = vcmask 261120
    %v171 = vsel %vm169, %v161, 0
    %v174 = vsel %vm169, %v153, 0
    %176 = vmatprep.subr.mxu0 0.0
    %177 = vmatpush1.xpose.msra.mxu0 %v174
    %178 = vmatprep.subr.mxu0 0.0
    %179 = vmatpush1.xpose.msra.mxu0 0.0
    %180 = vmatprep.subr.mxu0 0.0
    %181 = vmatpush1.xpose.msra.mxu0 0.0
    %182 = vmatprep.subr.mxu0 0.0
    %183 = vmatpush1.xpose.msra.mxu0 0.0
    %184 = vmatprep.subr.mxu0 0.0
    %185 = vmatpush1.xpose.msra.mxu0 0.0
    %186 = vmatprep.subr.mxu0 0.0
    %187 = vmatpush1.xpose.msra.mxu0 0.0
    %188 = vmatprep.subr.mxu0 0.0
    %189 = vmatpush1.xpose.msra.mxu0 0.0
    %190 = vmatprep.subr.mxu0 0.0
    %191 = vmatpush1.xpose.msra.mxu0 0.0
    %192 = vmatprep.subr.mxu0 0.0
    %193 = vmatpush1.xpose.msra.mxu0 0.0
    %194 = vmatprep.subr.mxu0 0.0
    %195 = vmatpush1.xpose.msra.mxu0 0.0
    %196 = vmatprep.subr.mxu0 0.0
    %197 = vmatpush1.xpose.msra.mxu0 0.0
    %198 = vmatprep.subr.mxu0 0.0
    %199 = vmatpush1.xpose.msra.mxu0 0.0
    %200 = vmatprep.subr.mxu0 0.0
    %201 = vmatpush1.xpose.msra.mxu0 0.0
    %202 = vmatprep.subr.mxu0 0.0
    %203 = vmatpush1.xpose.msra.mxu0 0.0
    %204 = vmatprep.subr.mxu0 0.0
    %205 = vmatpush1.xpose.msra.mxu0 0.0
    %206 = vmatprep.subr.mxu0 0.0
    %207 = vmatpush1.xpose.msra.mxu0 0.0
    %208 = vmatprep.subr.mxu0 0.0
    %209 = vmatpush1.xpose.msra.mxu0 0.0
    %210 = vmatprep.subr.mxu0 0.0
    %211 = vmatpush1.xpose.msra.mxu0 0.0
    %212 = vmatprep.subr.mxu0 0.0
    %213 = vmatpush1.xpose.msra.mxu0 0.0
    %214 = vmatprep.subr.mxu0 0.0
    %215 = vmatpush1.xpose.msra.mxu0 0.0
    %216 = vmatprep.subr.mxu0 0.0
    %217 = vmatpush1.xpose.msra.mxu0 0.0
    %218 = vmatprep.subr.mxu0 0.0
    %219 = vmatpush1.xpose.msra.mxu0 0.0
    %220 = vmatprep.subr.mxu0 0.0
    %221 = vmatpush1.xpose.msra.mxu0 0.0
    %222 = vmatprep.subr.mxu0 0.0
    %223 = vmatpush1.xpose.msra.mxu0 0.0
    %224 = vmatprep.subr.mxu0 0.0
    %225 = vmatpush1.xpose.msra.mxu0 0.0
    %226 = vmatprep.subr.mxu0 0.0
    %227 = vmatpush1.xpose.msra.mxu0 0.0
    %228 = vmatprep.subr.mxu0 0.0
    %229 = vmatpush1.xpose.msra.mxu0 0.0
    %230 = vmatprep.subr.mxu0 0.0
    %231 = vmatpush1.xpose.msra.mxu0 0.0
    %232 = vmatprep.subr.mxu0 0.0
    %233 = vmatpush1.xpose.msra.mxu0 0.0
    %234 = vmatprep.subr.mxu0 0.0
    %235 = vmatpush1.xpose.msra.mxu0 0.0
    %236 = vmatprep.subr.mxu0 0.0
    %237 = vmatpush1.xpose.msra.mxu0 0.0
    %238 = vmatprep.subr.mxu0 0.0
    %239 = vmatpush1.xpose.msra.mxu0 0.0
    %240 = vmatprep.mubr.f32.mxu0 0.0
    %241 = vmatmul.mubr.f32.gmra.mrb[0].mxu0 %v171
    %v242 = vpop.f32.mrb[0].mxu0
    %v243 = vadd.f32 %v168, %v242
    %v244 = vpop.f32.mrb[0].mxu0
    %245 = vdwg.mxu0
    %vm246 = vcmask 60416
    %v247 = vsel %vm246, %v243, -inf
    %248 = vmax.xlane.f32.xlu0 %v247
    %v249 = vpop.xlane.xlu0 %248
    %v250 = vsub.f32 %v243, %v249
    %v251 = vmul.f32 %v250, 1.442695
    %v252 = vpow.pop %v251
    %v253 = vsel %vm246, %v252, 0.0
    %254 = vadd.xlane.f32.xlu0 %v253
    %v255 = vpop.xlane.xlu0 %254
    %v256 = vrcp.pop %v255
    %v257 = vmul.f32 %v252, %v256
    %vm258 = vcmask 64512
    %v260 = vsel %vm258, %v257, 0
    %262 = vmatprep.subr.mxu0 0.0
    %263 = vmatpush1.msra.mxu0 %v153
    %264 = vmatprep.subr.mxu0 0.0
    %265 = vmatpush1.msra.mxu0 0.0
    %266 = vmatprep.subr.mxu0 0.0
    %267 = vmatpush1.msra.mxu0 0.0
    %268 = vmatprep.subr.mxu0 0.0
    %269 = vmatpush1.msra.mxu0 0.0
    %270 = vmatprep.subr.mxu0 0.0
    %271 = vmatpush1.msra.mxu0 0.0
    %272 = vmatprep.subr.mxu0 0.0
    %273 = vmatpush1.msra.mxu0 0.0
    %274 = vmatprep.subr.mxu0 0.0
    %275 = vmatpush1.msra.mxu0 0.0
    %276 = vmatprep.subr.mxu0 0.0
    %277 = vmatpush1.msra.mxu0 0.0
    %278 = vmatprep.subr.mxu0 0.0
    %279 = vmatpush1.msra.mxu0 0.0
    %280 = vmatprep.subr.mxu0 0.0
    %281 = vmatpush1.msra.mxu0 0.0
    %282 = vmatprep.subr.mxu0 0.0
    %283 = vmatpush1.msra.mxu0 0.0
    %284 = vmatprep.subr.mxu0 0.0
    %285 = vmatpush1.msra.mxu0 0.0
    %286 = vmatprep.subr.mxu0 0.0
    %287 = vmatpush1.msra.mxu0 0.0
    %288 = vmatprep.subr.mxu0 0.0
    %289 = vmatpush1.msra.mxu0 0.0
    %290 = vmatprep.subr.mxu0 0.0
    %291 = vmatpush1.msra.mxu0 0.0
    %292 = vmatprep.subr.mxu0 0.0
    %293 = vmatpush1.msra.mxu0 0.0
    %294 = vmatprep.subr.mxu0 0.0
    %295 = vmatpush1.msra.mxu0 0.0
    %296 = vmatprep.subr.mxu0 0.0
    %297 = vmatpush1.msra.mxu0 0.0
    %298 = vmatprep.subr.mxu0 0.0
    %299 = vmatpush1.msra.mxu0 0.0
    %300 = vmatprep.subr.mxu0 0.0
    %301 = vmatpush1.msra.mxu0 0.0
    %302 = vmatprep.subr.mxu0 0.0
    %303 = vmatpush1.msra.mxu0 0.0
    %304 = vmatprep.subr.mxu0 0.0
    %305 = vmatpush1.msra.mxu0 0.0
    %306 = vmatprep.subr.mxu0 0.0
    %307 = vmatpush1.msra.mxu0 0.0
    %308 = vmatprep.subr.mxu0 0.0
    %309 = vmatpush1.msra.mxu0 0.0
    %310 = vmatprep.subr.mxu0 0.0
    %311 = vmatpush1.msra.mxu0 0.0
    %312 = vmatprep.subr.mxu0 0.0
    %313 = vmatpush1.msra.mxu0 0.0
    %314 = vmatprep.subr.mxu0 0.0
    %315 = vmatpush1.msra.mxu0 0.0
    %316 = vmatprep.subr.mxu0 0.0
    %317 = vmatpush1.msra.mxu0 0.0
    %318 = vmatprep.subr.mxu0 0.0
    %319 = vmatpush1.msra.mxu0 0.0
    %320 = vmatprep.subr.mxu0 0.0
    %321 = vmatpush1.msra.mxu0 0.0
    %322 = vmatprep.subr.mxu0 0.0
    %323 = vmatpush1.msra.mxu0 0.0
    %324 = vmatprep.subr.mxu0 0.0
    %325 = vmatpush1.msra.mxu0 0.0
    %326 = vmatprep.mubr.f32.mxu0 0.0
    %327 = vmatmul.mubr.f32.gmra.mrb[0].mxu0 %v260
    %v328 = vpop.f32.mrb[0].mxu0
    %v329 = vadd.f32 0.0, %v328
    %v330 = vpop.f32.mrb[0].mxu0
    %331 = vdwg.mxu0
    %vm332 = vcmask 257024
    %333 = vst.msk [vmem:[#allocation5] sm:$0xf] %vm332, %v329
    %v334 = vlaneseq
    %v335 = vshrl.u32 %v334, 7
    %v336 = vsub.s32 1, %v335
    %v337 = vrot.slane %v164, %v336
    %v339 = vsel %vm169, %v158, 0
    %341 = vmatprep.subr.mxu0 0.0
    %342 = vmatpush1.xpose.msra.mxu0 %v339
    %343 = vmatprep.subr.mxu0 0.0
    %344 = vmatpush1.xpose.msra.mxu0 0.0
    %345 = vmatprep.subr.mxu0 0.0
    %346 = vmatpush1.xpose.msra.mxu0 0.0
    %347 = vmatprep.subr.mxu0 0.0
    %348 = vmatpush1.xpose.msra.mxu0 0.0
    %349 = vmatprep.subr.mxu0 0.0
    %350 = vmatpush1.xpose.msra.mxu0 0.0
    %351 = vmatprep.subr.mxu0 0.0
    %352 = vmatpush1.xpose.msra.mxu0 0.0
    %353 = vmatprep.subr.mxu0 0.0
    %354 = vmatpush1.xpose.msra.mxu0 0.0
    %355 = vmatprep.subr.mxu0 0.0
    %356 = vmatpush1.xpose.msra.mxu0 0.0
    %357 = vmatprep.subr.mxu0 0.0
    %358 = vmatpush1.xpose.msra.mxu0 0.0
    %359 = vmatprep.subr.mxu0 0.0
    %360 = vmatpush1.xpose.msra.mxu0 0.0
    %361 = vmatprep.subr.mxu0 0.0
    %362 = vmatpush1.xpose.msra.mxu0 0.0
    %363 = vmatprep.subr.mxu0 0.0
    %364 = vmatpush1.xpose.msra.mxu0 0.0
    %365 = vmatprep.subr.mxu0 0.0
    %366 = vmatpush1.xpose.msra.mxu0 0.0
    %367 = vmatprep.subr.mxu0 0.0
    %368 = vmatpush1.xpose.msra.mxu0 0.0
    %369 = vmatprep.subr.mxu0 0.0
    %370 = vmatpush1.xpose.msra.mxu0 0.0
    %371 = vmatprep.subr.mxu0 0.0
    %372 = vmatpush1.xpose.msra.mxu0 0.0
    %373 = vmatprep.subr.mxu0 0.0
    %374 = vmatpush1.xpose.msra.mxu0 0.0
    %375 = vmatprep.subr.mxu0 0.0
    %376 = vmatpush1.xpose.msra.mxu0 0.0
    %377 = vmatprep.subr.mxu0 0.0
    %378 = vmatpush1.xpose.msra.mxu0 0.0
    %379 = vmatprep.subr.mxu0 0.0
    %380 = vmatpush1.xpose.msra.mxu0 0.0
    %381 = vmatprep.subr.mxu0 0.0
    %382 = vmatpush1.xpose.msra.mxu0 0.0
    %383 = vmatprep.subr.mxu0 0.0
    %384 = vmatpush1.xpose.msra.mxu0 0.0
    %385 = vmatprep.subr.mxu0 0.0
    %386 = vmatpush1.xpose.msra.mxu0 0.0
    %387 = vmatprep.subr.mxu0 0.0
    %388 = vmatpush1.xpose.msra.mxu0 0.0
    %389 = vmatprep.subr.mxu0 0.0
    %390 = vmatpush1.xpose.msra.mxu0 0.0
    %391 = vmatprep.subr.mxu0 0.0
    %392 = vmatpush1.xpose.msra.mxu0 0.0
    %393 = vmatprep.subr.mxu0 0.0
    %394 = vmatpush1.xpose.msra.mxu0 0.0
    %395 = vmatprep.subr.mxu0 0.0
    %396 = vmatpush1.xpose.msra.mxu0 0.0
    %397 = vmatprep.subr.mxu0 0.0
    %398 = vmatpush1.xpose.msra.mxu0 0.0
    %399 = vmatprep.subr.mxu0 0.0
    %400 = vmatpush1.xpose.msra.mxu0 0.0
    %401 = vmatprep.subr.mxu0 0.0
    %402 = vmatpush1.xpose.msra.mxu0 0.0
    %403 = vmatprep.subr.mxu0 0.0
    %404 = vmatpush1.xpose.msra.mxu0 0.0
    %405 = vmatprep.mubr.f32.mxu0 0.0
    %406 = vmatmul.mubr.f32.gmra.mrb[0].mxu0 %v171
    %v407 = vpop.f32.mrb[0].mxu0
    %v408 = vadd.f32 %v337, %v407
    %v409 = vpop.f32.mrb[0].mxu0
    %410 = vdwg.mxu0
    %v411 = vsel %vm246, %v408, -inf
    %412 = vmax.xlane.f32.xlu0 %v411
    %v413 = vpop.xlane.xlu0 %412
    %v414 = vsub.f32 %v408, %v413
    %v415 = vmul.f32 %v414, 1.442695
    %v416 = vpow.pop %v415
    %v417 = vsel %vm246, %v416, 0.0
    %418 = vadd.xlane.f32.xlu0 %v417
    %v419 = vpop.xlane.xlu0 %418
    %v420 = vrcp.pop %v419
    %v421 = vmul.f32 %v416, %v420
    %v423 = vsel %vm258, %v421, 0
    %425 = vmatprep.subr.mxu0 0.0
    %426 = vmatpush1.msra.mxu0 %v158
    %427 = vmatprep.subr.mxu0 0.0
    %428 = vmatpush1.msra.mxu0 0.0
    %429 = vmatprep.subr.mxu0 0.0
    %430 = vmatpush1.msra.mxu0 0.0
    %431 = vmatprep.subr.mxu0 0.0
    %432 = vmatpush1.msra.mxu0 0.0
    %433 = vmatprep.subr.mxu0 0.0
    %434 = vmatpush1.msra.mxu0 0.0
    %435 = vmatprep.subr.mxu0 0.0
    %436 = vmatpush1.msra.mxu0 0.0
    %437 = vmatprep.subr.mxu0 0.0
    %438 = vmatpush1.msra.mxu0 0.0
    %439 = vmatprep.subr.mxu0 0.0
    %440 = vmatpush1.msra.mxu0 0.0
    %441 = vmatprep.subr.mxu0 0.0
    %442 = vmatpush1.msra.mxu0 0.0
    %443 = vmatprep.subr.mxu0 0.0
    %444 = vmatpush1.msra.mxu0 0.0
    %445 = vmatprep.subr.mxu0 0.0
    %446 = vmatpush1.msra.mxu0 0.0
    %447 = vmatprep.subr.mxu0 0.0
    %448 = vmatpush1.msra.mxu0 0.0
    %449 = vmatprep.subr.mxu0 0.0
    %450 = vmatpush1.msra.mxu0 0.0
    %451 = vmatprep.subr.mxu0 0.0
    %452 = vmatpush1.msra.mxu0 0.0
    %453 = vmatprep.subr.mxu0 0.0
    %454 = vmatpush1.msra.mxu0 0.0
    %455 = vmatprep.subr.mxu0 0.0
    %456 = vmatpush1.msra.mxu0 0.0
    %457 = vmatprep.subr.mxu0 0.0
    %458 = vmatpush1.msra.mxu0 0.0
    %459 = vmatprep.subr.mxu0 0.0
    %460 = vmatpush1.msra.mxu0 0.0
    %461 = vmatprep.subr.mxu0 0.0
    %462 = vmatpush1.msra.mxu0 0.0
    %463 = vmatprep.subr.mxu0 0.0
    %464 = vmatpush1.msra.mxu0 0.0
    %465 = vmatprep.subr.mxu0 0.0
    %466 = vmatpush1.msra.mxu0 0.0
    %467 = vmatprep.subr.mxu0 0.0
    %468 = vmatpush1.msra.mxu0 0.0
    %469 = vmatprep.subr.mxu0 0.0
    %470 = vmatpush1.msra.mxu0 0.0
    %471 = vmatprep.subr.mxu0 0.0
    %472 = vmatpush1.msra.mxu0 0.0
    %473 = vmatprep.subr.mxu0 0.0
    %474 = vmatpush1.msra.mxu0 0.0
    %475 = vmatprep.subr.mxu0 0.0
    %476 = vmatpush1.msra.mxu0 0.0
    %477 = vmatprep.subr.mxu0 0.0
    %478 = vmatpush1.msra.mxu0 0.0
    %479 = vmatprep.subr.mxu0 0.0
    %480 = vmatpush1.msra.mxu0 0.0
    %481 = vmatprep.subr.mxu0 0.0
    %482 = vmatpush1.msra.mxu0 0.0
    %483 = vmatprep.subr.mxu0 0.0
    %484 = vmatpush1.msra.mxu0 0.0
    %485 = vmatprep.subr.mxu0 0.0
    %486 = vmatpush1.msra.mxu0 0.0
    %487 = vmatprep.subr.mxu0 0.0
    %488 = vmatpush1.msra.mxu0 0.0
    %489 = vmatprep.mubr.f32.mxu0 0.0
    %490 = vmatmul.mubr.f32.gmra.mrb[0].mxu0 %v423
    %v491 = vpop.f32.mrb[0].mxu0
    %v492 = vadd.f32 0.0, %v491
    %v493 = vpop.f32.mrb[0].mxu0
    %494 = vdwg.mxu0
    %495 = vst.msk [vmem:[#allocation5 + $0x4] sm:$0xf] %vm332, %v492
    %v496 = vld [vmem:[#allocation5] sm:$0xff]
    %v497 = vld [vmem:[#allocation2 + $0x88] sm:$0xff]
    %v498 = vld [vmem:[#allocation2 + $0x90] sm:$0xff]
    %v499 = vld [vmem:[#allocation2 + $0x98] sm:$0xff]
    %v500 = vld [vmem:[#allocation2 + $0xa0] sm:$0xff]
    %v501 = vld [vmem:[#allocation2 + $0xa8] sm:$0x1]
    %v502 = vlaneseq
    %v503 = vshrl.u32 %v502, 7
    %v504 = vsub.s32 0, %v503
    %v505 = vrot.slane %v501, %v504
    %v507 = vsel %vm169, %v496, 0
    %509 = vmatprep.subr.mxu0 0.0
    %510 = vmatpush1.msra.mxu0 %v497
    %511 = vmatprep.subr.mxu0 0.0
    %512 = vmatpush1.msra.mxu0 %v498
    %513 = vmatprep.subr.mxu0 0.0
    %514 = vmatpush1.msra.mxu0 %v499
    %515 = vmatprep.subr.mxu0 0.0
    %516 = vmatpush1.msra.mxu0 %v500
    %517 = vmatprep.subr.mxu0 0.0
    %518 = vmatpush1.msra.mxu0 0.0
    %519 = vmatprep.subr.mxu0 0.0
    %520 = vmatpush1.msra.mxu0 0.0
    %521 = vmatprep.subr.mxu0 0.0
    %522 = vmatpush1.msra.mxu0 0.0
    %523 = vmatprep.subr.mxu0 0.0
    %524 = vmatpush1.msra.mxu0 0.0
    %525 = vmatprep.subr.mxu0 0.0
    %526 = vmatpush1.msra.mxu0 0.0
    %527 = vmatprep.subr.mxu0 0.0
    %528 = vmatpush1.msra.mxu0 0.0
    %529 = vmatprep.subr.mxu0 0.0
    %530 = vmatpush1.msra.mxu0 0.0
    %531 = vmatprep.subr.mxu0 0.0
    %532 = vmatpush1.msra.mxu0 0.0
    %533 = vmatprep.subr.mxu0 0.0
    %534 = vmatpush1.msra.mxu0 0.0
    %535 = vmatprep.subr.mxu0 0.0
    %536 = vmatpush1.msra.mxu0 0.0
    %537 = vmatprep.subr.mxu0 0.0
    %538 = vmatpush1.msra.mxu0 0.0
    %539 = vmatprep.subr.mxu0 0.0
    %540 = vmatpush1.msra.mxu0 0.0
    %541 = vmatprep.subr.mxu0 0.0
    %542 = vmatpush1.msra.mxu0 0.0
    %543 = vmatprep.subr.mxu0 0.0
    %544 = vmatpush1.msra.mxu0 0.0
    %545 = vmatprep.subr.mxu0 0.0
    %546 = vmatpush1.msra.mxu0 0.0
    %547 = vmatprep.subr.mxu0 0.0
    %548 = vmatpush1.msra.mxu0 0.0
    %549 = vmatprep.subr.mxu0 0.0
    %550 = vmatpush1.msra.mxu0 0.0
    %551 = vmatprep.subr.mxu0 0.0
    %552 = vmatpush1.msra.mxu0 0.0
    %553 = vmatprep.subr.mxu0 0.0
    %554 = vmatpush1.msra.mxu0 0.0
    %555 = vmatprep.subr.mxu0 0.0
    %556 = vmatpush1.msra.mxu0 0.0
    %557 = vmatprep.subr.mxu0 0.0
    %558 = vmatpush1.msra.mxu0 0.0
    %559 = vmatprep.subr.mxu0 0.0
    %560 = vmatpush1.msra.mxu0 0.0
    %561 = vmatprep.subr.mxu0 0.0
    %562 = vmatpush1.msra.mxu0 0.0
    %563 = vmatprep.subr.mxu0 0.0
    %564 = vmatpush1.msra.mxu0 0.0
    %565 = vmatprep.subr.mxu0 0.0
    %566 = vmatpush1.msra.mxu0 0.0
    %567 = vmatprep.subr.mxu0 0.0
    %568 = vmatpush1.msra.mxu0 0.0
    %569 = vmatprep.subr.mxu0 0.0
    %570 = vmatpush1.msra.mxu0 0.0
    %571 = vmatprep.subr.mxu0 0.0
    %572 = vmatpush1.msra.mxu0 0.0
    %573 = vmatprep.mubr.f32.mxu0 0.0
    %574 = vmatmul.mubr.f32.gmra.mrb[0].mxu0 %v507
    %v575 = vpop.f32.mrb[0].mxu0
    %v576 = vadd.f32 %v505, %v575
    %v577 = vpop.f32.mrb[0].mxu0
    %578 = vdwg.mxu0
    %v579 = vmax.f32 %v576, 0.0
    %v580 = vld [vmem:[#allocation2 + $0xb0] sm:$0xff]
    %v581 = vld [vmem:[#allocation2 + $0xb8] sm:$0xff]
    %v582 = vld [vmem:[#allocation2 + $0xc0] sm:$0xff]
    %v583 = vld [vmem:[#allocation2 + $0xc8] sm:$0xff]
    %v584 = vld [vmem:[#allocation2 + $0xd0] sm:$0xff]
    %v585 = vld [vmem:[#allocation2 + $0xd8] sm:$0xff]
    %v586 = vld [vmem:[#allocation2 + $0xe0] sm:$0xff]
    %v587 = vld [vmem:[#allocation2 + $0xe8] sm:$0xff]
    %vm588 = vcmask 523264
    %v590 = vsel %vm588, %v579, 0
    %592 = vmatprep.subr.mxu0 0.0
    %593 = vmatpush1.msra.mxu0 %v580
    %594 = vmatprep.subr.mxu0 0.0
    %595 = vmatpush1.msra.mxu0 %v581
    %596 = vmatprep.subr.mxu0 0.0
    %597 = vmatpush1.msra.mxu0 %v582
    %598 = vmatprep.subr.mxu0 0.0
    %599 = vmatpush1.msra.mxu0 %v583
    %600 = vmatprep.subr.mxu0 0.0
    %601 = vmatpush1.msra.mxu0 %v584
    %602 = vmatprep.subr.mxu0 0.0
    %603 = vmatpush1.msra.mxu0 %v585
    %604 = vmatprep.subr.mxu0 0.0
    %605 = vmatpush1.msra.mxu0 %v586
    %606 = vmatprep.subr.mxu0 0.0
    %607 = vmatpush1.msra.mxu0 %v587
    %608 = vmatprep.subr.mxu0 0.0
    %609 = vmatpush1.msra.mxu0 0.0
    %610 = vmatprep.subr.mxu0 0.0
    %611 = vmatpush1.msra.mxu0 0.0
    %612 = vmatprep.subr.mxu0 0.0
    %613 = vmatpush1.msra.mxu0 0.0
    %614 = vmatprep.subr.mxu0 0.0
    %615 = vmatpush1.msra.mxu0 0.0
    %616 = vmatprep.subr.mxu0 0.0
    %617 = vmatpush1.msra.mxu0 0.0
    %618 = vmatprep.subr.mxu0 0.0
    %619 = vmatpush1.msra.mxu0 0.0
    %620 = vmatprep.subr.mxu0 0.0
    %621 = vmatpush1.msra.mxu0 0.0
    %622 = vmatprep.subr.mxu0 0.0
    %623 = vmatpush1.msra.mxu0 0.0
    %624 = vmatprep.subr.mxu0 0.0
    %625 = vmatpush1.msra.mxu0 0.0
    %626 = vmatprep.subr.mxu0 0.0
    %627 = vmatpush1.msra.mxu0 0.0
    %628 = vmatprep.subr.mxu0 0.0
    %629 = vmatpush1.msra.mxu0 0.0
    %630 = vmatprep.subr.mxu0 0.0
    %631 = vmatpush1.msra.mxu0 0.0
    %632 = vmatprep.subr.mxu0 0.0
    %633 = vmatpush1.msra.mxu0 0.0
    %634 = vmatprep.subr.mxu0 0.0
    %635 = vmatpush1.msra.mxu0 0.0
    %636 = vmatprep.subr.mxu0 0.0
    %637 = vmatpush1.msra.mxu0 0.0
    %638 = vmatprep.subr.mxu0 0.0
    %639 = vmatpush1.msra.mxu0 0.0
    %640 = vmatprep.subr.mxu0 0.0
    %641 = vmatpush1.msra.mxu0 0.0
    %642 = vmatprep.subr.mxu0 0.0
    %643 = vmatpush1.msra.mxu0 0.0
    %644 = vmatprep.subr.mxu0 0.0
    %645 = vmatpush1.msra.mxu0 0.0
    %646 = vmatprep.subr.mxu0 0.0
    %647 = vmatpush1.msra.mxu0 0.0
    %648 = vmatprep.subr.mxu0 0.0
    %649 = vmatpush1.msra.mxu0 0.0
    %650 = vmatprep.subr.mxu0 0.0
    %651 = vmatpush1.msra.mxu0 0.0
    %652 = vmatprep.subr.mxu0 0.0
    %653 = vmatpush1.msra.mxu0 0.0
    %654 = vmatprep.subr.mxu0 0.0
    %655 = vmatpush1.msra.mxu0 0.0
    %656 = vmatprep.mubr.f32.mxu0 0.0
    %657 = vmatmul.mubr.f32.gmra.mrb[0].mxu0 %v590
    %v658 = vpop.f32.mrb[0].mxu0
    %v659 = vadd.f32 0.0, %v658
    %v660 = vpop.f32.mrb[0].mxu0
    %661 = vdwg.mxu0
    %v662 = vld [vmem:[#allocation2 + $0xf8] sm:$0xff]
    %v663 = vld [vmem:[#allocation2 + $0x100] sm:$0x3]
    %v664 = vld [vmem:[#allocation2 + $0xf0] sm:$0x1]
    %v665 = vmul.f32 %v659, %v662
    %v666 = vlaneseq
    %v667 = vshrl.u32 %v666, 7
    %v668 = vsub.s32 0, %v667
    %v669 = vrot.slane %v664, %v668
    %v671 = vsel %vm258, %v663, 0
    %673 = vmatprep.subr.mxu0 0.0
    %674 = vmatpush1.msra.mxu0 %v665
    %675 = vmatprep.subr.mxu0 0.0
    %676 = vmatpush1.msra.mxu0 0.0
    %677 = vmatprep.subr.mxu0 0.0
    %678 = vmatpush1.msra.mxu0 0.0
    %679 = vmatprep.subr.mxu0 0.0
    %680 = vmatpush1.msra.mxu0 0.0
    %681 = vmatprep.subr.mxu0 0.0
    %682 = vmatpush1.msra.mxu0 0.0
    %683 = vmatprep.subr.mxu0 0.0
    %684 = vmatpush1.msra.mxu0 0.0
    %685 = vmatprep.subr.mxu0 0.0
    %686 = vmatpush1.msra.mxu0 0.0
    %687 = vmatprep.subr.mxu0 0.0
    %688 = vmatpush1.msra.mxu0 0.0
    %689 = vmatprep.subr.mxu0 0.0
    %690 = vmatpush1.msra.mxu0 0.0
    %691 = vmatprep.subr.mxu0 0.0
    %692 = vmatpush1.msra.mxu0 0.0
    %693 = vmatprep.subr.mxu0 0.0
    %694 = vmatpush1.msra.mxu0 0.0
    %695 = vmatprep.subr.mxu0 0.0
    %696 = vmatpush1.msra.mxu0 0.0
    %697 = vmatprep.subr.mxu0 0.0
    %698 = vmatpush1.msra.mxu0 0.0
    %699 = vmatprep.subr.mxu0 0.0
    %700 = vmatpush1.msra.mxu0 0.0
    %701 = vmatprep.subr.mxu0 0.0
    %702 = vmatpush1.msra.mxu0 0.0
    %703 = vmatprep.subr.mxu0 0.0
    %704 = vmatpush1.msra.mxu0 0.0
    %705 = vmatprep.subr.mxu0 0.0
    %706 = vmatpush1.msra.mxu0 0.0
    %707 = vmatprep.subr.mxu0 0.0
    %708 = vmatpush1.msra.mxu0 0.0
    %709 = vmatprep.subr.mxu0 0.0
    %710 = vmatpush1.msra.mxu0 0.0
    %711 = vmatprep.subr.mxu0 0.0
    %712 = vmatpush1.msra.mxu0 0.0
    %713 = vmatprep.subr.mxu0 0.0
    %714 = vmatpush1.msra.mxu0 0.0
    %715 = vmatprep.subr.mxu0 0.0
    %716 = vmatpush1.msra.mxu0 0.0
    %717 = vmatprep.subr.mxu0 0.0
    %718 = vmatpush1.msra.mxu0 0.0
    %719 = vmatprep.subr.mxu0 0.0
    %720 = vmatpush1.msra.mxu0 0.0
    %721 = vmatprep.subr.mxu0 0.0
    %722 = vmatpush1.msra.mxu0 0.0
    %723 = vmatprep.subr.mxu0 0.0
    %724 = vmatpush1.msra.mxu0 0.0
    %725 = vmatprep.subr.mxu0 0.0
    %726 = vmatpush1.msra.mxu0 0.0
    %727 = vmatprep.subr.mxu0 0.0
    %728 = vmatpush1.msra.mxu0 0.0
    %729 = vmatprep.subr.mxu0 0.0
    %730 = vmatpush1.msra.mxu0 0.0
    %731 = vmatprep.subr.mxu0 0.0
    %732 = vmatpush1.msra.mxu0 0.0
    %733 = vmatprep.subr.mxu0 0.0
    %734 = vmatpush1.msra.mxu0 0.0
    %735 = vmatprep.subr.mxu0 0.0
    %736 = vmatpush1.msra.mxu0 0.0
    %737 = vmatprep.mubr.f32.mxu0 0.0
    %738 = vmatmul.mubr.f32.gmra.mrb[0].mxu0 %v671
    %v739 = vpop.f32.mrb[0].mxu0
    %v740 = vadd.f32 %v669, %v739
    %v741 = vpop.f32.mrb[0].mxu0
    %742 = vdwg.mxu0
    %v743 = vsub.f32 0.0, %v740
    %v744 = vmul.f32 %v743, 1.442695
    %v745 = vpow.pop %v744
    %v746 = vadd.f32 %v745, 1.0
    %v747 = vrcp.pop %v746
    %v748 = vmul.f32 1.0, %v747
    %vm749 = vcmask 25600
    %750 = vst.msk [vmem:[#allocation6] sm:$0x3] %vm749, %v748
    %v751 = vld [vmem:[#allocation2 + $0x108] sm:$0xff]
    %v752 = vld [vmem:[#allocation2 + $0x110] sm:$0xff]
    %v753 = vld [vmem:[#allocation2 + $0x118] sm:$0xff]
    %v754 = vld [vmem:[#allocation2 + $0x120] sm:$0xff]
    %v755 = vld [vmem:[#allocation2 + $0x128] sm:$0x1]
    %v756 = vld [vmem:[#allocation2 + $0x130] sm:$0xff]
    %v757 = vld [vmem:[#allocation2 + $0x138] sm:$0xff]
    %v758 = vld [vmem:[#allocation2 + $0x140] sm:$0xff]
    %v759 = vld [vmem:[#allocation2 + $0x148] sm:$0xff]
    %v760 = vld [vmem:[#allocation2 + $0x150] sm:$0xff]
    %v761 = vld [vmem:[#allocation2 + $0x158] sm:$0xff]
    %v762 = vld [vmem:[#allocation2 + $0x160] sm:$0xff]
    %v763 = vld [vmem:[#allocation2 + $0x168] sm:$0xff]
    %v764 = vld [vmem:[#allocation2 + $0x170] sm:$0xff]
    %v765 = vld [vmem:[#allocation2 + $0x178] sm:$0xff]
    %v766 = vld [vmem:[#allocation2 + $0x180] sm:$0xff]
    %v767 = vld [vmem:[#allocation2 + $0x188] sm:$0xff]
    %v768 = vld [vmem:[#allocation2 + $0x190] sm:$0xff]
    %v769 = vld [vmem:[#allocation2 + $0x198] sm:$0xff]
    %v770 = vld [vmem:[#allocation2 + $0x1a0] sm:$0xff]
    %v771 = vld [vmem:[#allocation2 + $0x1a8] sm:$0xff]
    %v772 = vld [vmem:[#allocation2 + $0x1b0] sm:$0x1]
    %v773 = vlaneseq
    %v774 = vshrl.u32 %v773, 7
    %v775 = vsub.s32 0, %v774
    %v776 = vrot.slane %v755, %v775
    %777 = vmatprep.subr.mxu0 0.0
    %778 = vmatpush1.msra.mxu0 %v751
    %779 = vmatprep.subr.mxu0 0.0
    %780 = vmatpush1.msra.mxu0 %v752
    %781 = vmatprep.subr.mxu0 0.0
    %782 = vmatpush1.msra.mxu0 %v753
    %783 = vmatprep.subr.mxu0 0.0
    %784 = vmatpush1.msra.mxu0 %v754
    %785 = vmatprep.subr.mxu0 0.0
    %786 = vmatpush1.msra.mxu0 0.0
    %787 = vmatprep.subr.mxu0 0.0
    %788 = vmatpush1.msra.mxu0 0.0
    %789 = vmatprep.subr.mxu0 0.0
    %790 = vmatpush1.msra.mxu0 0.0
    %791 = vmatprep.subr.mxu0 0.0
    %792 = vmatpush1.msra.mxu0 0.0
    %793 = vmatprep.subr.mxu0 0.0
    %794 = vmatpush1.msra.mxu0 0.0
    %795 = vmatprep.subr.mxu0 0.0
    %796 = vmatpush1.msra.mxu0 0.0
    %797 = vmatprep.subr.mxu0 0.0
    %798 = vmatpush1.msra.mxu0 0.0
    %799 = vmatprep.subr.mxu0 0.0
    %800 = vmatpush1.msra.mxu0 0.0
    %801 = vmatprep.subr.mxu0 0.0
    %802 = vmatpush1.msra.mxu0 0.0
    %803 = vmatprep.subr.mxu0 0.0
    %804 = vmatpush1.msra.mxu0 0.0
    %805 = vmatprep.subr.mxu0 0.0
    %806 = vmatpush1.msra.mxu0 0.0
    %807 = vmatprep.subr.mxu0 0.0
    %808 = vmatpush1.msra.mxu0 0.0
    %809 = vmatprep.subr.mxu0 0.0
    %810 = vmatpush1.msra.mxu0 0.0
    %811 = vmatprep.subr.mxu0 0.0
    %812 = vmatpush1.msra.mxu0 0.0
    %813 = vmatprep.subr.mxu0 0.0
    %814 = vmatpush1.msra.mxu0 0.0
    %815 = vmatprep.subr.mxu0 0.0
    %816 = vmatpush1.msra.mxu0 0.0
    %817 = vmatprep.subr.mxu0 0.0
    %818 = vmatpush1.msra.mxu0 0.0
    %819 = vmatprep.subr.mxu0 0.0
    %820 = vmatpush1.msra.mxu0 0.0
    %821 = vmatprep.subr.mxu0 0.0
    %822 = vmatpush1.msra.mxu0 0.0
    %823 = vmatprep.subr.mxu0 0.0
    %824 = vmatpush1.msra.mxu0 0.0
    %825 = vmatprep.subr.mxu0 0.0
    %826 = vmatpush1.msra.mxu0 0.0
    %827 = vmatprep.subr.mxu0 0.0
    %828 = vmatpush1.msra.mxu0 0.0
    %829 = vmatprep.subr.mxu0 0.0
    %830 = vmatpush1.msra.mxu0 0.0
    %831 = vmatprep.subr.mxu0 0.0
    %832 = vmatpush1.msra.mxu0 0.0
    %833 = vmatprep.subr.mxu0 0.0
    %834 = vmatpush1.msra.mxu0 0.0
    %835 = vmatprep.subr.mxu0 0.0
    %836 = vmatpush1.msra.mxu0 0.0
    %837 = vmatprep.subr.mxu0 0.0
    %838 = vmatpush1.msra.mxu0 0.0
    %839 = vmatprep.subr.mxu0 0.0
    %840 = vmatpush1.msra.mxu0 0.0
    %841 = vmatprep.mubr.f32.mxu0 0.0
    %842 = vmatmul.mubr.f32.gmra.mrb[0].mxu0 %v507
    %v843 = vpop.f32.mrb[0].mxu0
    %v844 = vadd.f32 %v776, %v843
    %v845 = vpop.f32.mrb[0].mxu0
    %846 = vdwg.mxu0
    %v847 = vmax.f32 %v844, 0.0
    %v848 = vlaneseq
    %v849 = vshrl.u32 %v848, 7
    %v850 = vsub.s32 0, %v849
    %v851 = vrot.slane %v772, %v850
    %852 = vmatprep.subr.mxu0 0.0
    %853 = vmatpush1.msra.mxu0 %v756
    %854 = vmatprep.subr.mxu0 0.0
    %855 = vmatpush1.msra.mxu0 %v757
    %856 = vmatprep.subr.mxu0 0.0
    %857 = vmatpush1.msra.mxu0 %v758
    %858 = vmatprep.subr.mxu0 0.0
    %859 = vmatpush1.msra.mxu0 %v759
    %860 = vmatprep.subr.mxu0 0.0
    %861 = vmatpush1.msra.mxu0 %v760
    %862 = vmatprep.subr.mxu0 0.0
    %863 = vmatpush1.msra.mxu0 %v761
    %864 = vmatprep.subr.mxu0 0.0
    %865 = vmatpush1.msra.mxu0 %v762
    %866 = vmatprep.subr.mxu0 0.0
    %867 = vmatpush1.msra.mxu0 %v763
    %868 = vmatprep.subr.mxu0 0.0
    %869 = vmatpush1.msra.mxu0 %v764
    %870 = vmatprep.subr.mxu0 0.0
    %871 = vmatpush1.msra.mxu0 %v765
    %872 = vmatprep.subr.mxu0 0.0
    %873 = vmatpush1.msra.mxu0 %v766
    %874 = vmatprep.subr.mxu0 0.0
    %875 = vmatpush1.msra.mxu0 %v767
    %876 = vmatprep.subr.mxu0 0.0
    %877 = vmatpush1.msra.mxu0 %v768
    %878 = vmatprep.subr.mxu0 0.0
    %879 = vmatpush1.msra.mxu0 %v769
    %880 = vmatprep.subr.mxu0 0.0
    %881 = vmatpush1.msra.mxu0 %v770
    %882 = vmatprep.subr.mxu0 0.0
    %883 = vmatpush1.msra.mxu0 %v771
    %884 = vmatprep.subr.mxu0 0.0
    %885 = vmatpush1.msra.mxu0 0.0
    %886 = vmatprep.subr.mxu0 0.0
    %887 = vmatpush1.msra.mxu0 0.0
    %888 = vmatprep.subr.mxu0 0.0
    %889 = vmatpush1.msra.mxu0 0.0
    %890 = vmatprep.subr.mxu0 0.0
    %891 = vmatpush1.msra.mxu0 0.0
    %892 = vmatprep.subr.mxu0 0.0
    %893 = vmatpush1.msra.mxu0 0.0
    %894 = vmatprep.subr.mxu0 0.0
    %895 = vmatpush1.msra.mxu0 0.0
    %896 = vmatprep.subr.mxu0 0.0
    %897 = vmatpush1.msra.mxu0 0.0
    %898 = vmatprep.subr.mxu0 0.0
    %899 = vmatpush1.msra.mxu0 0.0
    %900 = vmatprep.subr.mxu0 0.0
    %901 = vmatpush1.msra.mxu0 0.0
    %902 = vmatprep.subr.mxu0 0.0
    %903 = vmatpush1.msra.mxu0 0.0
    %904 = vmatprep.subr.mxu0 0.0
    %905 = vmatpush1.msra.mxu0 0.0
    %906 = vmatprep.subr.mxu0 0.0
    %907 = vmatpush1.msra.mxu0 0.0
    %908 = vmatprep.subr.mxu0 0.0
    %909 = vmatpush1.msra.mxu0 0.0
    %910 = vmatprep.subr.mxu0 0.0
    %911 = vmatpush1.msra.mxu0 0.0
    %912 = vmatprep.subr.mxu0 0.0
    %913 = vmatpush1.msra.mxu0 0.0
    %914 = vmatprep.subr.mxu0 0.0
    %915 = vmatpush1.msra.mxu0 0.0
    %916 = vmatprep.mubr.f32.mxu0 0.0
    %917 = vmatmul.mubr.f32.gmra.mrb[0].mxu0 %v847
    %v918 = vpop.f32.mrb[0].mxu0
    %v919 = vadd.f32 %v851, %v918
    %v920 = vpop.f32.mrb[0].mxu0
    %921 = vdwg.mxu0
    %v922 = vmul.f32 %v919, %v919
    %923 = vadd.xlane.f32.xlu0 %v922
    %v924 = vpop.xlane.xlu0 %923
    %v925 = vmax.f32 %v924, 1e-24
    %v926 = vrsqrt.pop %v925
    %v927 = vmul.f32 %v919, %v926
    %928 = vst [vmem:[#allocation8] sm:$0xff] %v927
    // Predicated region
    $region22: #{contrastive_entity_classifier_forward.1} parent=1 // pred_check
      _
    $region23: #{contrastive_entity_classifier_forward.1} parent=1 // pred_check_branch
      %930 = sbr.rel (0) target = $region25
    $region24: #{contrastive_entity_classifier_forward.1} parent=1 // pred_region
      %s932 = ssub.s32 128, 128
      %933 = vsyncadd [#allocation4], %s932
      %s935 = sshll.u32 [#allocation5], 4
      %s936 = int_to_ptr.vmem [resolvable:$true] %s935
      %938 = dma.vmem_to_hbm [thread:$0]  %s936, 128, %s4, [#allocation4]
    $region25: #{contrastive_entity_classifier_forward.1} parent=1 // pred_fallthru
      _
    // Predicated region
    $region26: #{contrastive_entity_classifier_forward.1} parent=1 // pred_check
      _
    $region27: #{contrastive_entity_classifier_forward.1} parent=1 // pred_check_branch
      %940 = sbr.rel (0) target = $region29
    $region28: #{contrastive_entity_classifier_forward.1} parent=1 // pred_region
      %s942 = ssub.s32 32, 32
      %943 = vsyncadd [#allocation7], %s942
      %s945 = sshll.u32 [#allocation6], 4
      %s946 = int_to_ptr.vmem [resolvable:$true] %s945
      %948 = dma.vmem_to_hbm [thread:$0]  %s946, 32, %s5, [#allocation7]
    $region29: #{contrastive_entity_classifier_forward.1} parent=1 // pred_fallthru
      _
    // Predicated region
    $region30: #{contrastive_entity_classifier_forward.1} parent=1 // pred_check
      _
    $region31: #{contrastive_entity_classifier_forward.1} parent=1 // pred_check_branch
      %950 = sbr.rel (0) target = $region33
    $region32: #{contrastive_entity_classifier_forward.1} parent=1 // pred_region
      %s952 = ssub.s32 128, 128
      %953 = vsyncadd [#allocation7], %s952
      %s955 = sshll.u32 [#allocation8], 4
      %s956 = int_to_ptr.vmem [resolvable:$true] %s955
      %958 = dma.vmem_to_hbm [thread:$0]  %s956, 128, %s6, [#allocation7]
    $region33: #{contrastive_entity_classifier_forward.1} parent=1 // pred_fallthru
      _
    // Predicated region
    $region34: #{contrastive_entity_classifier_forward.1} parent=1 // pred_check
      _
    $region35: #{contrastive_entity_classifier_forward.1} parent=1 // pred_check_branch
      %960 = sbr.rel (0) target = $region37
    $region36: #{contrastive_entity_classifier_forward.1} parent=1 // pred_region
      %961 = dma.done [#allocation4], 128
    $region37: #{contrastive_entity_classifier_forward.1} parent=1 // pred_fallthru
      _
    // Predicated region
    $region38: #{contrastive_entity_classifier_forward.1} parent=1 // pred_check
      _
    $region39: #{contrastive_entity_classifier_forward.1} parent=1 // pred_check_branch
      %963 = sbr.rel (0) target = $region41
    $region40: #{contrastive_entity_classifier_forward.1} parent=1 // pred_region
      %964 = dma.done [#allocation7], 32
    $region41: #{contrastive_entity_classifier_forward.1} parent=1 // pred_fallthru
      _
    // Predicated region
    $region42: #{contrastive_entity_classifier_forward.1} parent=1 // pred_check
      _
    $region43: #{contrastive_entity_classifier_forward.1} parent=1 // pred_check_branch
      %966 = sbr.rel (0) target = $region45
    $region44: #{contrastive_entity_classifier_forward.1} parent=1 // pred_region
      %967 = dma.done [#allocation7], 128
    $region45: #{contrastive_entity_classifier_forward.1} parent=1 // pred_fallthru
      _
    %968 = vsyncpa [#allocation3], 1
    %969 = vsyncpa [#allocation4], 1
    %970 = vsyncpa [#allocation7], 1

</llo_original>
